<compile_context>
chip_gen: v7x
topology: tpu7x:2x2x1
jax: 0.10.0
libtpu: 0.0.40
codegen_flags: <defaults>
</compile_context>

<pallas_src>
import functools

import jax
import jax.numpy as jnp
from jax import lax
from jax.experimental import pallas as pl
from jax.experimental.pallas import tpu as pltpu


def _round_up(n, m):
    return ((n + m - 1) // m) * m


def _pad2(a, rows, cols, value=0.0):
    return jnp.pad(a, ((0, rows - a.shape[0]), (0, cols - a.shape[1])),
                   constant_values=value)


def _vmem_budget_bytes():
    """Generation-aware VMEM budget: ~0.75x physical capacity.

    ~96 MiB on v5e/v6e (128 MiB VMEM), ~48 MiB on v7x (64 MiB VMEM).
    """
    try:
        cap = pltpu.get_tpu_info().vmem_capacity_bytes
    except Exception:
        cap = 64 * 1024 * 1024  # conservative fallback (v7x-sized)
    return int(0.75 * cap)


def _bn_train(out, gamma, beta, batch_real):
    """BatchNorm1d, training mode: batch mean / biased variance over the REAL
    batch rows only (padded rows are masked out of the statistics)."""
    row = lax.broadcasted_iota(jnp.int32, (out.shape[0], 1), 0)
    valid = (row < batch_real).astype(jnp.float32)
    inv_n = 1.0 / float(batch_real)
    mean = jnp.sum(out * valid, axis=0, keepdims=True) * inv_n
    cen = (out - mean) * valid
    var = jnp.sum(cen * cen, axis=0, keepdims=True) * inv_n
    normed = (out - mean) * lax.rsqrt(var + 1e-5)
    return normed * gamma + beta


# ----------------------------------------------------------------------------
# FUSED kernel: single invocation, everything resident, internal stack unrolled
# ----------------------------------------------------------------------------
def resnet_block_fused_kernel(num_internal, batch_real, *refs):
    if num_internal > 0:
        (x_ref, w1_ref, b1_ref, wint_ref, bint_ref,
         wl_ref, bl_ref, gamma_ref, beta_ref, o_ref) = refs
    else:
        (x_ref, w1_ref, b1_ref,
         wl_ref, bl_ref, gamma_ref, beta_ref, o_ref) = refs
        wint_ref = bint_ref = None

    residual = jnp.dot(x_ref[...], w1_ref[...],
                       preferred_element_type=jnp.float32) + b1_ref[...]
    act = residual
    # Static unroll: the fused path is only selected for shallow / small
    # stacks, so the unrolled code stays small and LLO-schedulable.
    for l in range(num_internal):
        act = jnp.dot(act.astype(jnp.bfloat16), wint_ref[l],
                      preferred_element_type=jnp.float32) + bint_ref[l]
        act = jnp.maximum(act, 0.0)

    out = act + residual
    out = jnp.dot(out.astype(jnp.bfloat16), wl_ref[...],
                  preferred_element_type=jnp.float32) + bl_ref[...]
    out = jnp.maximum(out, 0.0)
    o_ref[...] = _bn_train(out, gamma_ref[...], beta_ref[...], batch_real)


# ----------------------------------------------------------------------------
# STREAMING kernel: one grid step == one internal layer; first/last steps also
# do the entry Linear and the exit Linear->ReLU->BatchNorm respectively.
# ----------------------------------------------------------------------------
def resnet_block_stream_kernel(batch_real,
                               x_ref, w1_ref, b1_ref, wint_ref, bint_ref,
                               wl_ref, bl_ref, gamma_ref, beta_ref,
                               o_ref, res_ref, act_ref):
    """x_ref    : (Bp, Kp) bf16       w1_ref  : (Kp, Dp) bf16   b1_ref : (1, Dp) f32
       wint_ref : (1, Dp, Dp) bf16    bint_ref: (1, 1, Dp) f32   (streamed per step)
       wl_ref   : (Dp, Fp) bf16       bl/gamma/beta : (1, Fp) f32
       o_ref    : (Bp, Fp) f32
       res_ref  : (Bp, Dp) f32 scratch (f32 residual carry)
       act_ref  : (Bp, Dp) bf16 scratch (bf16 activation carry)"""
    i = pl.program_id(0)
    last = pl.num_programs(0) - 1

    # ---- first grid step: residual = linear1(x) -----------------------------
    @pl.when(i == 0)
    def _():
        residual = jnp.dot(x_ref[...], w1_ref[...],
                           preferred_element_type=jnp.float32) + b1_ref[...]
        res_ref[...] = residual
        act_ref[...] = residual.astype(jnp.bfloat16)

    # ---- every grid step: one internal (Linear -> ReLU) layer ---------------
    h = jnp.dot(act_ref[...], wint_ref[0],
                preferred_element_type=jnp.float32) + bint_ref[0]
    act_ref[...] = jnp.maximum(h, 0.0).astype(jnp.bfloat16)

    # ---- last grid step: skip add, last Linear -> ReLU -> BatchNorm1d -------
    @pl.when(i == last)
    def _():
        out = act_ref[...].astype(jnp.float32) + res_ref[...]
        out = jnp.dot(out.astype(jnp.bfloat16), wl_ref[...],
                      preferred_element_type=jnp.float32) + bl_ref[...]
        out = jnp.maximum(out, 0.0)
        o_ref[...] = _bn_train(out, gamma_ref[...], beta_ref[...], batch_real)


# ----------------------------------------------------------------------------
# Wrapper
# ----------------------------------------------------------------------------
def resnet_block_pallas(x, params, *, depth, force_streaming=False):
    num_internal = depth - 2
    B, in_features = x.shape
    res_net_dim = params["w1"].shape[1]
    out_features = params["w_last"].shape[1]

    # TPU-friendly padded shapes: 128-lane features, 16-sublane (bf16) batch.
    B_p = _round_up(B, 16)
    K_p = _round_up(in_features, 128)
    D_p = _round_up(res_net_dim, 128)
    F_p = _round_up(out_features, 128)

    # Pad + cast matmul operands to bf16; biases / BN affine params stay f32.
    # Zero feature padding is exact: padded columns stay identically zero
    # through every layer and are sliced off at the end.
    x_p = _pad2(x, B_p, K_p).astype(jnp.bfloat16)
    w1_p = _pad2(params["w1"], K_p, D_p).astype(jnp.bfloat16)
    b1_p = _pad2(params["b1"], 1, D_p)
    wl_p = _pad2(params["w_last"], D_p, F_p).astype(jnp.bfloat16)
    bl_p = _pad2(params["b_last"], 1, F_p)
    gamma_p = _pad2(params["gamma"], 1, F_p, value=1.0)
    beta_p = _pad2(params["beta"], 1, F_p)

    if num_internal > 0:
        wint_p = jnp.pad(
            params["w_int"],
            ((0, 0), (0, D_p - res_net_dim), (0, D_p - res_net_dim)),
        ).astype(jnp.bfloat16)
        bint_p = jnp.pad(params["b_int"],
                         ((0, 0), (0, 0), (0, D_p - res_net_dim)))

    bf16, f32 = 2, 4
    budget = _vmem_budget_bytes()

    resident_common = (B_p * K_p * bf16                      # x
                       + K_p * D_p * bf16 + D_p * f32        # w1, b1
                       + D_p * F_p * bf16 + 3 * F_p * f32    # w_last, b_last, gamma, beta
                       + B_p * F_p * f32)                    # output

    fused_bytes = (resident_common
                   + num_internal * (D_p * D_p * bf16 + D_p * f32)  # all w_int/b_int
                   + 2 * B_p * D_p * f32)                           # residual + act live values

    flops = 2 * B_p * (K_p * D_p + num_internal * D_p * D_p + D_p * F_p)
    io_bytes = resident_common + num_internal * (D_p * D_p * bf16 + D_p * f32)
    cost = pl.CostEstimate(flops=flops, transcendentals=F_p,
                           bytes_accessed=io_bytes)

    use_fused = (not force_streaming) and (num_internal == 0
                                           or fused_bytes <= budget // 2)

    if use_fused:
        # depth == 2 (no internal layers) always lands here: no dummy w_int
        # tensor, no wasted HBM DMA / VMEM double-buffering.
        vmem_limit = int(min(budget, max(16 << 20, int(1.5 * fused_bytes))))
        args = [x_p, w1_p, b1_p]
        if num_internal > 0:
            args += [wint_p, bint_p]
        args += [wl_p, bl_p, gamma_p, beta_p]
        out_p = pl.pallas_call(
            functools.partial(resnet_block_fused_kernel, num_internal, B),
            out_shape=jax.ShapeDtypeStruct((B_p, F_p), jnp.float32),
            compiler_params=pltpu.CompilerParams(vmem_limit_bytes=vmem_limit),
            cost_estimate=cost,
        )(*args)
        return out_p[:B, :out_features]

    # ------------------------------ streaming path ---------------------------
    assert num_internal > 0, "streaming path requires at least one internal layer"
    # Pallas implicitly double-buffers EVERY pipelined input and the output
    # (not just the streamed w_int/b_int), so the footprint counts 2x for all
    # of them plus the two scratch carries.
    stream_bytes = (2 * (resident_common
                         + D_p * D_p * bf16 + D_p * f32)   # streamed w_int/b_int per buffer
                    + B_p * D_p * f32                      # residual carry (f32)
                    + B_p * D_p * bf16)                    # activation carry (bf16)
    if stream_bytes > budget:
        # Fail loudly instead of silently clipping the limit (which would spill
        # or fail to compile); see the w_int column-tiling TODO at the top.
        raise NotImplementedError(
            f"streamed-weight footprint {stream_bytes} B exceeds VMEM budget "
            f"{budget} B; w_int column-tiling path not implemented")
    vmem_limit = int(min(budget, max(16 << 20, int(1.25 * stream_bytes))))

    grid_spec = pltpu.PrefetchScalarGridSpec(
        num_scalar_prefetch=0,
        grid=(num_internal,),
        in_specs=[
            pl.BlockSpec((B_p, K_p), lambda i: (0, 0)),         # x        (resident)
            pl.BlockSpec((K_p, D_p), lambda i: (0, 0)),         # w1       (resident)
            pl.BlockSpec((1, D_p), lambda i: (0, 0)),           # b1
            pl.BlockSpec((1, D_p, D_p), lambda i: (i, 0, 0)),   # w_int    (streamed)
            pl.BlockSpec((1, 1, D_p), lambda i: (i, 0, 0)),     # b_int    (streamed)
            pl.BlockSpec((D_p, F_p), lambda i: (0, 0)),         # w_last
            pl.BlockSpec((1, F_p), lambda i: (0, 0)),           # b_last
            pl.BlockSpec((1, F_p), lambda i: (0, 0)),           # gamma
            pl.BlockSpec((1, F_p), lambda i: (0, 0)),           # beta
        ],
        out_specs=pl.BlockSpec((B_p, F_p), lambda i: (0, 0)),   # lane-dense output
        scratch_shapes=[pltpu.VMEM((B_p, D_p), jnp.float32),    # residual carry
                        pltpu.VMEM((B_p, D_p), jnp.bfloat16)],  # activation carry (bf16)
    )

    out_p = pl.pallas_call(
        functools.partial(resnet_block_stream_kernel, B),
        out_shape=jax.ShapeDtypeStruct((B_p, F_p), jnp.float32),
        grid_spec=grid_spec,
        compiler_params=pltpu.CompilerParams(
            dimension_semantics=("arbitrary",),   # layer axis carries scratch state
            vmem_limit_bytes=vmem_limit),
        cost_estimate=cost,
    )(x_p, w1_p, b1_p, wint_p, bint_p, wl_p, bl_p, gamma_p, beta_p)
    return out_p[:B, :out_features]


# ----------------------------------------------------------------------------
# Parameters & pure-JAX reference
# ----------------------------------------------------------------------------
def make_params(key, in_features, out_features, res_net_dim, depth):
    """Deterministic synthetic parameters (PyTorch-style uniform fan-in init).

    Linear weights are stored pre-transposed as (in, out) so y = x @ W + b."""
    num_internal = depth - 2
    keys = jax.random.split(key, 3)

    def lin_init(k, fan_in, shape_w, shape_b):
        bound = 1.0 / jnp.sqrt(float(fan_in))
        kw, kb = jax.random.split(k)
        w = jax.random.uniform(kw, shape_w, jnp.float32, -bound, bound)
        b = jax.random.uniform(kb, shape_b, jnp.float32, -bound, bound)
        return w, b

    w1, b1 = lin_init(keys[0], in_features,
                      (in_features, res_net_dim), (1, res_net_dim))
    w_int, b_int = lin_init(
        keys[1], res_net_dim,
        (num_internal, res_net_dim, res_net_dim), (num_internal, 1, res_net_dim))
    w_last, b_last = lin_init(keys[2], res_net_dim,
                              (res_net_dim, out_features), (1, out_features))
    gamma = jnp.ones((1, out_features), jnp.float32)
    beta = jnp.zeros((1, out_features), jnp.float32)
    return {
        "w1": w1, "b1": b1,
        "w_int": w_int, "b_int": b_int,
        "w_last": w_last, "b_last": b_last,
        "gamma": gamma, "beta": beta,
    }


def resnet_block_reference(x, params, *, depth, matmul_dtype=jnp.float32,
                           act_carry_dtype=None):
    """Pure-JAX reference mirroring the PyTorch forward.

    matmul_dtype=bf16 reproduces the kernels' MXU precision policy (bf16
    operands, f32 accumulation).  act_carry_dtype=bf16 additionally reproduces
    the streaming path's bf16 activation carry between internal layers."""
    def mm(a, w):
        return jnp.dot(a.astype(matmul_dtype), w.astype(matmul_dtype),
                       preferred_element_type=jnp.float32)

    residual = mm(x, params["w1"]) + params["b1"]
    out = residual
    for i in range(depth - 2):
        out = jnp.maximum(mm(out, params["w_int"][i]) + params["b_int"][i], 0.0)
        if act_carry_dtype is not None:
            out = out.astype(act_carry_dtype).astype(jnp.float32)
    out = out + residual
    out = jnp.maximum(mm(out, params["w_last"]) + params["b_last"], 0.0)
    mean = jnp.mean(out, axis=0, keepdims=True)
    var = jnp.mean((out - mean) ** 2, axis=0, keepdims=True)
    out = (out - mean) * lax.rsqrt(var + 1e-5)
    return out * params["gamma"] + params["beta"]


if __name__ == "__main__":
    # Small shapes consistent with the module's forward (2-D input (batch, in_features)).
    B, in_features, out_features, res_net_dim, depth = 8, 32, 16, 64, 3

    key = jax.random.PRNGKey(0)
    kx, kp = jax.random.split(key)
    x = jax.random.normal(kx, (B, in_features), jnp.float32)
    params = make_params(kp, in_features, out_features, res_net_dim, depth)

    # --- fused path (auto-selected for small problems) ------------------------
    out_fused = jax.block_until_ready(resnet_block_pallas(x, params, depth=depth))
    assert out_fused.shape == (B, out_features)
    ref_fused = resnet_block_reference(x, params, depth=depth,
                                       matmul_dtype=jnp.bfloat16)
    assert jnp.allclose(out_fused, ref_fused, atol=1e-2, rtol=1e-2), \
        "fused path mismatch vs precision-matched reference"

    # --- streaming path (forced, to validate the large-problem code path) ----
    out_stream = jax.block_until_ready(
        resnet_block_pallas(x, params, depth=depth, force_streaming=True))
    ref_stream = resnet_block_reference(x, params, depth=depth,
                                        matmul_dtype=jnp.bfloat16,
                                        act_carry_dtype=jnp.bfloat16)
    assert jnp.allclose(out_stream, ref_stream, atol=1e-2, rtol=1e-2), \
        "streaming path mismatch vs precision-matched reference"

    # --- depth == 2: no internal layers, no dummy streamed weights -----------
    params2 = make_params(kp, in_features, out_features, res_net_dim, 2)
    out2 = jax.block_until_ready(resnet_block_pallas(x, params2, depth=2))
    assert out2.shape == (B, out_features)
    ref2 = resnet_block_reference(x, params2, depth=2, matmul_dtype=jnp.bfloat16)
    assert jnp.allclose(out2, ref2, atol=1e-2, rtol=1e-2), \
        "depth-2 path mismatch vs precision-matched reference"

    print("KERNEL_OK")
</pallas_src>

<mosaic_0001>
module attributes {stable_mosaic.version = 11 : i64} {
  func.func @resnet_block_fused_kernel(%arg0: memref<16x128xbf16, #tpu.memory_space<vmem>>, %arg1: memref<128x128xbf16, #tpu.memory_space<vmem>>, %arg2: memref<1x128xf32, #tpu.memory_space<vmem>>, %arg3: memref<1x128x128xbf16, #tpu.memory_space<vmem>>, %arg4: memref<1x1x128xf32, #tpu.memory_space<vmem>>, %arg5: memref<128x128xbf16, #tpu.memory_space<vmem>>, %arg6: memref<1x128xf32, #tpu.memory_space<vmem>>, %arg7: memref<1x128xf32, #tpu.memory_space<vmem>>, %arg8: memref<1x128xf32, #tpu.memory_space<vmem>>, %arg9: memref<16x128xf32, #tpu.memory_space<vmem>>) attributes {dimension_semantics = [], scalar_prefetch = 0 : i64, scratch_operands = 0 : i64, tpu.core_type = #tpu.core_type<tc>} {
    %c0 = arith.constant 0 : index
    %c0_0 = arith.constant 0 : index
    %0 = vector.load %arg0[%c0, %c0_0] : memref<16x128xbf16, #tpu.memory_space<vmem>>, vector<16x128xbf16>
    %c0_1 = arith.constant 0 : index
    %c0_2 = arith.constant 0 : index
    %1 = vector.load %arg1[%c0_1, %c0_2] : memref<128x128xbf16, #tpu.memory_space<vmem>>, vector<128x128xbf16>
    %cst = arith.constant dense<0.000000e+00> : vector<16x128xf32>
    %2 = tpu.matmul %0, %1, %cst {dimension_numbers = #tpu.dot_dimension_numbers<[1], [0], [0], [1], [0, 0, 1, 1], [], []>} : vector<16x128xbf16>, vector<128x128xbf16>, vector<16x128xf32> -> vector<16x128xf32>
    %c0_3 = arith.constant 0 : index
    %c0_4 = arith.constant 0 : index
    %3 = vector.load %arg2[%c0_3, %c0_4] : memref<1x128xf32, #tpu.memory_space<vmem>>, vector<1x128xf32>
    %4 = vector.broadcast %3 : vector<1x128xf32> to vector<16x128xf32>
    %5 = arith.addf %2, %4 : vector<16x128xf32>
    %6 = arith.truncf %5 : vector<16x128xf32> to vector<16x128xbf16>
    %c0_5 = arith.constant 0 : index
    %c0_6 = arith.constant 0 : index
    %c0_7 = arith.constant 0 : index
    %7 = vector.load %arg3[%c0_5, %c0_6, %c0_7] : memref<1x128x128xbf16, #tpu.memory_space<vmem>>, vector<1x128x128xbf16>
    %8 = vector.shape_cast %7 : vector<1x128x128xbf16> to vector<128x128xbf16>
    %cst_8 = arith.constant dense<0.000000e+00> : vector<16x128xf32>
    %9 = tpu.matmul %6, %8, %cst_8 {dimension_numbers = #tpu.dot_dimension_numbers<[1], [0], [0], [1], [0, 0, 1, 1], [], []>} : vector<16x128xbf16>, vector<128x128xbf16>, vector<16x128xf32> -> vector<16x128xf32>
    %c0_9 = arith.constant 0 : index
    %c0_10 = arith.constant 0 : index
    %c0_11 = arith.constant 0 : index
    %10 = vector.load %arg4[%c0_9, %c0_10, %c0_11] : memref<1x1x128xf32, #tpu.memory_space<vmem>>, vector<1x1x128xf32>
    %11 = vector.shape_cast %10 : vector<1x1x128xf32> to vector<1x128xf32>
    %12 = vector.broadcast %11 : vector<1x128xf32> to vector<16x128xf32>
    %13 = arith.addf %9, %12 : vector<16x128xf32>
    %cst_12 = arith.constant 0.000000e+00 : f32
    %14 = vector.broadcast %cst_12 : f32 to vector<16x128xf32>
    %15 = arith.maximumf %13, %14 : vector<16x128xf32>
    %16 = arith.addf %15, %5 : vector<16x128xf32>
    %17 = arith.truncf %16 : vector<16x128xf32> to vector<16x128xbf16>
    %c0_13 = arith.constant 0 : index
    %c0_14 = arith.constant 0 : index
    %18 = vector.load %arg5[%c0_13, %c0_14] : memref<128x128xbf16, #tpu.memory_space<vmem>>, vector<128x128xbf16>
    %cst_15 = arith.constant dense<0.000000e+00> : vector<16x128xf32>
    %19 = tpu.matmul %17, %18, %cst_15 {dimension_numbers = #tpu.dot_dimension_numbers<[1], [0], [0], [1], [0, 0, 1, 1], [], []>} : vector<16x128xbf16>, vector<128x128xbf16>, vector<16x128xf32> -> vector<16x128xf32>
    %c0_16 = arith.constant 0 : index
    %c0_17 = arith.constant 0 : index
    %20 = vector.load %arg6[%c0_16, %c0_17] : memref<1x128xf32, #tpu.memory_space<vmem>>, vector<1x128xf32>
    %21 = vector.broadcast %20 : vector<1x128xf32> to vector<16x128xf32>
    %22 = arith.addf %19, %21 : vector<16x128xf32>
    %cst_18 = arith.constant 0.000000e+00 : f32
    %23 = vector.broadcast %cst_18 : f32 to vector<16x128xf32>
    %24 = arith.maximumf %22, %23 : vector<16x128xf32>
    %c0_19 = arith.constant 0 : index
    %c0_20 = arith.constant 0 : index
    %25 = vector.load %arg7[%c0_19, %c0_20] : memref<1x128xf32, #tpu.memory_space<vmem>>, vector<1x128xf32>
    %c0_21 = arith.constant 0 : index
    %c0_22 = arith.constant 0 : index
    %26 = vector.load %arg8[%c0_21, %c0_22] : memref<1x128xf32, #tpu.memory_space<vmem>>, vector<1x128xf32>
    %27 = tpu.iota {dimensions = array<i32: 0>} : vector<16x1xi32>
    %c8_i32 = arith.constant 8 : i32
    %28 = vector.broadcast %c8_i32 : i32 to vector<16x1xi32>
    %29 = arith.cmpi slt, %27, %28 : vector<16x1xi32>
    %30 = arith.extui %29 : vector<16x1xi1> to vector<16x1xi32>
    %31 = arith.sitofp %30 : vector<16x1xi32> to vector<16x1xf32>
    %32 = vector.broadcast %31 : vector<16x1xf32> to vector<16x128xf32>
    %33 = arith.mulf %24, %32 : vector<16x128xf32>
    %cst_23 = arith.constant dense<0.000000e+00> : vector<128xf32>
    %34 = vector.multi_reduction <add>, %33, %cst_23 [0] : vector<16x128xf32> to vector<128xf32>
    %35 = vector.shape_cast %34 : vector<128xf32> to vector<1x128xf32>
    %cst_24 = arith.constant 1.250000e-01 : f32
    %36 = vector.broadcast %cst_24 : f32 to vector<1x128xf32>
    %37 = arith.mulf %35, %36 : vector<1x128xf32>
    %38 = vector.broadcast %37 : vector<1x128xf32> to vector<16x128xf32>
    %39 = arith.subf %24, %38 : vector<16x128xf32>
    %40 = vector.broadcast %31 : vector<16x1xf32> to vector<16x128xf32>
    %41 = arith.mulf %39, %40 : vector<16x128xf32>
    %42 = arith.mulf %41, %41 : vector<16x128xf32>
    %cst_25 = arith.constant dense<0.000000e+00> : vector<128xf32>
    %43 = vector.multi_reduction <add>, %42, %cst_25 [0] : vector<16x128xf32> to vector<128xf32>
    %44 = vector.shape_cast %43 : vector<128xf32> to vector<1x128xf32>
    %cst_26 = arith.constant 1.250000e-01 : f32
    %45 = vector.broadcast %cst_26 : f32 to vector<1x128xf32>
    %46 = arith.mulf %44, %45 : vector<1x128xf32>
    %47 = vector.broadcast %37 : vector<1x128xf32> to vector<16x128xf32>
    %48 = arith.subf %24, %47 : vector<16x128xf32>
    %cst_27 = arith.constant 9.99999974E-6 : f32
    %49 = vector.broadcast %cst_27 : f32 to vector<1x128xf32>
    %50 = arith.addf %46, %49 : vector<1x128xf32>
    %51 = math.rsqrt %50 : vector<1x128xf32>
    %52 = vector.broadcast %51 : vector<1x128xf32> to vector<16x128xf32>
    %53 = arith.mulf %48, %52 : vector<16x128xf32>
    %54 = vector.broadcast %25 : vector<1x128xf32> to vector<16x128xf32>
    %55 = arith.mulf %53, %54 : vector<16x128xf32>
    %56 = vector.broadcast %26 : vector<1x128xf32> to vector<16x128xf32>
    %57 = arith.addf %55, %56 : vector<16x128xf32>
    %c0_28 = arith.constant 0 : index
    %c0_29 = arith.constant 0 : index
    %58 = vector.load %arg9[%c0_28, %c0_29] : memref<16x128xf32, #tpu.memory_space<vmem>>, vector<16x128xf32>
    tpu.vector_store %arg9[%c0_28, %c0_29], %57 {strides = array<i32>} : memref<16x128xf32, #tpu.memory_space<vmem>>, vector<16x128xf32>,
    return
  }
}

</mosaic_0001>

<llo_original>
// kernel: tpu_custom_call.1
$region0: #{tpu_custom_call.1}
  #allocation0 [shape = 'u32[]', space=smem, size = 0x4, offset = 0x4, fixed_abs, tag = 'smem constant byte address 0x4 - core index']
  #allocation1 [shape = 'u32[144,128]{1,0:T(1,128)}', space=vmem, size = 0x12000, scoped, tag = 'internal scratch']
  %s0 = inlined_call_operand.hbm [shape: bf16[16,128], index: 0, kind: input, shape index: {}]
  %s1 = inlined_call_operand.hbm [shape: bf16[128,128], index: 1, kind: input, shape index: {}]
  %s2 = inlined_call_operand.vmem [shape: f32[1,128], index: 2, kind: input, shape index: {}]
  %s3 = inlined_call_operand.hbm [shape: bf16[1,128,128], index: 3, kind: input, shape index: {}]
  %s4 = inlined_call_operand.vmem [shape: f32[1,1,128], index: 4, kind: input, shape index: {}]
  %s5 = inlined_call_operand.hbm [shape: bf16[128,128], index: 5, kind: input, shape index: {}]
  %s6 = inlined_call_operand.vmem [shape: f32[1,128], index: 6, kind: input, shape index: {}]
  %s7 = inlined_call_operand.vmem [shape: f32[1,128], index: 7, kind: input, shape index: {}]
  %s8 = inlined_call_operand.vmem [shape: f32[1,128], index: 8, kind: input, shape index: {}]
  %s9 = inlined_call_operand.hbm [shape: f32[16,128], index: 9, kind: output, shape index: {}]
  %s10 = sld [smem:[#allocation0]]
  $region62: #{tpu_custom_call.1} parent=0
    _
  %s12 = ssub.s32 1, %s10
  %s13 = scalar_select 0, %s12, %s10
  $region1: #{tpu_custom_call.1} parent=0
    #allocation2 [shape = 'u8[4096]{0}', space=vmem, size = 0x1000, scoped, tag = 'input window, operand 0, single buffered']
    #allocation3 [shape = 's32[1]{0}', space=sflag, size = 0x4, scoped, tag = 'scoped memory for tpu_custom_call.1']
    #allocation4 [shape = 's32[1]{0}', space=sflag, size = 0x4, scoped, tag = 'scoped memory for tpu_custom_call.1']
    #allocation5 [shape = 'u8[32768]{0}', space=vmem, size = 0x8000, scoped, tag = 'input window, operand 1, single buffered']
    #allocation6 [shape = 's32[1]{0}', space=sflag, size = 0x4, scoped, tag = 'scoped memory for tpu_custom_call.1']
    #allocation7 [shape = 'u8[32768]{0}', space=vmem, size = 0x8000, scoped, tag = 'input window, operand 3, single buffered']
    #allocation8 [shape = 'u8[32768]{0}', space=vmem, size = 0x8000, scoped, tag = 'input window, operand 5, single buffered']
    #allocation9 [shape = 's32[1]{0}', space=sflag, size = 0x4, scoped, tag = 'scoped memory for tpu_custom_call.1']
    #allocation10 [shape = 'u8[8192]{0}', space=vmem, size = 0x2000, scoped, tag = 'output window, operand 0, single buffered']
    %14 = vsyncpa [#allocation3], 0
    %15 = vsyncpa [#allocation6], 0
    %16 = vsyncpa [#allocation9], 0
    %17 = vsyncpa [#allocation4], 0
    // Predicated region
    $region2: #{tpu_custom_call.1} parent=1 // pred_check
      _
    $region3: #{tpu_custom_call.1} parent=1 // pred_check_branch
      %19 = sbr.rel (0) target = $region5
    $region4: #{tpu_custom_call.1} parent=1 // pred_region
      %s21 = ssub.s32 128, 128
      %22 = vsyncadd [#allocation3], %s21
      %s23 = sshll.u32 [#allocation2], 4
      %s24 = int_to_ptr.vmem [resolvable:$true] %s23
      %29 = dma.hbm_to_vmem [thread:$0]  %s0, 128, %s24, [#allocation3], 64, 64, 4
    $region5: #{tpu_custom_call.1} parent=1 // pred_fallthru
      _
    // Predicated region
    $region6: #{tpu_custom_call.1} parent=1 // pred_check
      _
    $region7: #{tpu_custom_call.1} parent=1 // pred_check_branch
      %31 = sbr.rel (0) target = $region9
    $region8: #{tpu_custom_call.1} parent=1 // pred_region
      %s33 = ssub.s32 1024, 1024
      %34 = vsyncadd [#allocation6], %s33
      %s35 = sshll.u32 [#allocation5], 4
      %s36 = int_to_ptr.vmem [resolvable:$true] %s35
      %41 = dma.hbm_to_vmem [thread:$0]  %s1, 1024, %s36, [#allocation6], 64, 64, 4
    $region9: #{tpu_custom_call.1} parent=1 // pred_fallthru
      _
    // Predicated region
    $region10: #{tpu_custom_call.1} parent=1 // pred_check
      _
    $region11: #{tpu_custom_call.1} parent=1 // pred_check_branch
      %43 = sbr.rel (0) target = $region13
    $region12: #{tpu_custom_call.1} parent=1 // pred_region
      _
    $region13: #{tpu_custom_call.1} parent=1 // pred_fallthru
      _
    // Predicated region
    $region14: #{tpu_custom_call.1} parent=1 // pred_check
      _
    $region15: #{tpu_custom_call.1} parent=1 // pred_check_branch
      %45 = sbr.rel (0) target = $region17
    $region16: #{tpu_custom_call.1} parent=1 // pred_region
      %s47 = ssub.s32 1024, 1024
      %48 = vsyncadd [#allocation6], %s47
      %s49 = sshll.u32 [#allocation7], 4
      %s50 = int_to_ptr.vmem [resolvable:$true] %s49
      %55 = dma.hbm_to_vmem [thread:$0]  %s3, 1024, %s50, [#allocation6], 64, 64, 4
    $region17: #{tpu_custom_call.1} parent=1 // pred_fallthru
      _
    // Predicated region
    $region18: #{tpu_custom_call.1} parent=1 // pred_check
      _
    $region19: #{tpu_custom_call.1} parent=1 // pred_check_branch
      %57 = sbr.rel (0) target = $region21
    $region20: #{tpu_custom_call.1} parent=1 // pred_region
      _
    $region21: #{tpu_custom_call.1} parent=1 // pred_fallthru
      _
    // Predicated region
    $region22: #{tpu_custom_call.1} parent=1 // pred_check
      _
    $region23: #{tpu_custom_call.1} parent=1 // pred_check_branch
      %59 = sbr.rel (0) target = $region25
    $region24: #{tpu_custom_call.1} parent=1 // pred_region
      %s61 = ssub.s32 1024, 1024
      %62 = vsyncadd [#allocation9], %s61
      %s63 = sshll.u32 [#allocation8], 4
      %s64 = int_to_ptr.vmem [resolvable:$true] %s63
      %69 = dma.hbm_to_vmem [thread:$0]  %s5, 1024, %s64, [#allocation9], 64, 64, 4
    $region25: #{tpu_custom_call.1} parent=1 // pred_fallthru
      _
    // Predicated region
    $region26: #{tpu_custom_call.1} parent=1 // pred_check
      _
    $region27: #{tpu_custom_call.1} parent=1 // pred_check_branch
      %71 = sbr.rel (0) target = $region29
    $region28: #{tpu_custom_call.1} parent=1 // pred_region
      _
    $region29: #{tpu_custom_call.1} parent=1 // pred_fallthru
      _
    // Predicated region
    $region30: #{tpu_custom_call.1} parent=1 // pred_check
      _
    $region31: #{tpu_custom_call.1} parent=1 // pred_check_branch
      %73 = sbr.rel (0) target = $region33
    $region32: #{tpu_custom_call.1} parent=1 // pred_region
      _
    $region33: #{tpu_custom_call.1} parent=1 // pred_fallthru
      _
    // Predicated region
    $region34: #{tpu_custom_call.1} parent=1 // pred_check
      _
    $region35: #{tpu_custom_call.1} parent=1 // pred_check_branch
      %75 = sbr.rel (0) target = $region37
    $region36: #{tpu_custom_call.1} parent=1 // pred_region
      _
    $region37: #{tpu_custom_call.1} parent=1 // pred_fallthru
      _
    // Predicated region
    $region38: #{tpu_custom_call.1} parent=1 // pred_check
      _
    $region39: #{tpu_custom_call.1} parent=1 // pred_check_branch
      %77 = sbr.rel (0) target = $region41
    $region40: #{tpu_custom_call.1} parent=1 // pred_region
      %78 = dma.done [#allocation3], 128
    $region41: #{tpu_custom_call.1} parent=1 // pred_fallthru
      _
    // Predicated region
    $region42: #{tpu_custom_call.1} parent=1 // pred_check
      _
    $region43: #{tpu_custom_call.1} parent=1 // pred_check_branch
      %80 = sbr.rel (0) target = $region45
    $region44: #{tpu_custom_call.1} parent=1 // pred_region
      %81 = dma.done [#allocation6], 1024
    $region45: #{tpu_custom_call.1} parent=1 // pred_fallthru
      _
    // Predicated region
    $region46: #{tpu_custom_call.1} parent=1 // pred_check
      _
    $region47: #{tpu_custom_call.1} parent=1 // pred_check_branch
      %83 = sbr.rel (0) target = $region49
    $region48: #{tpu_custom_call.1} parent=1 // pred_region
      %84 = dma.done [#allocation6], 1024
    $region49: #{tpu_custom_call.1} parent=1 // pred_fallthru
      _
    // Predicated region
    $region50: #{tpu_custom_call.1} parent=1 // pred_check
      _
    $region51: #{tpu_custom_call.1} parent=1 // pred_check_branch
      %86 = sbr.rel (0) target = $region53
    $region52: #{tpu_custom_call.1} parent=1 // pred_region
      %87 = dma.done [#allocation9], 1024
    $region53: #{tpu_custom_call.1} parent=1 // pred_fallthru
      _
    %v89 = vld [vmem:[#allocation2] sm:$0xf]
    %v90 = vld [vmem:[#allocation2 + $0x4] sm:$0xf]
    %v91 = vld [vmem:[#allocation5] sm:$0xf]
    %v92 = vld [vmem:[#allocation5 + $0x4] sm:$0xf]
    %v93 = vld [vmem:[#allocation5 + $0x8] sm:$0xf]
    %v94 = vld [vmem:[#allocation5 + $0xc] sm:$0xf]
    %v95 = vld [vmem:[#allocation5 + $0x10] sm:$0xf]
    %v96 = vld [vmem:[#allocation5 + $0x14] sm:$0xf]
    %v97 = vld [vmem:[#allocation5 + $0x18] sm:$0xf]
    %v98 = vld [vmem:[#allocation5 + $0x1c] sm:$0xf]
    %v99 = vld [vmem:[#allocation5 + $0x20] sm:$0xf]
    %v100 = vld [vmem:[#allocation5 + $0x24] sm:$0xf]
    %v101 = vld [vmem:[#allocation5 + $0x28] sm:$0xf]
    %v102 = vld [vmem:[#allocation5 + $0x2c] sm:$0xf]
    %v103 = vld [vmem:[#allocation5 + $0x30] sm:$0xf]
    %v104 = vld [vmem:[#allocation5 + $0x34] sm:$0xf]
    %v105 = vld [vmem:[#allocation5 + $0x38] sm:$0xf]
    %v106 = vld [vmem:[#allocation5 + $0x3c] sm:$0xf]
    %v107 = vld [vmem:[%s2] sm:$0x1]
    %v109 = vlaneseq
    %v110 = vshrl.u32 %v109, 7
    %v111 = vsub.s32 0, %v110
    %v112 = vrot.slane %v107, %v111
    %v116 = vunpack.c.l.b16 %v89
    %v117 = vunpack.c.l.b16 %v90
    %v118 = vpack.c.b16 %v117, %v116
    %v136 = vunpack.c.l.b16 %v91
    %v137 = vunpack.c.l.b16 %v92
    %v138 = vunpack.c.l.b16 %v93
    %v139 = vunpack.c.l.b16 %v94
    %v140 = vunpack.c.l.b16 %v95
    %v141 = vunpack.c.l.b16 %v96
    %v142 = vunpack.c.l.b16 %v97
    %v143 = vunpack.c.l.b16 %v98
    %v144 = vunpack.c.l.b16 %v99
    %v145 = vunpack.c.l.b16 %v100
    %v146 = vunpack.c.l.b16 %v101
    %v147 = vunpack.c.l.b16 %v102
    %v148 = vunpack.c.l.b16 %v103
    %v149 = vunpack.c.l.b16 %v104
    %v150 = vunpack.c.l.b16 %v105
    %v151 = vunpack.c.l.b16 %v106
    %v152 = vpack.c.b16 %v137, %v136
    %v153 = vpack.c.b16 %v139, %v138
    %v154 = vpack.c.b16 %v141, %v140
    %v155 = vpack.c.b16 %v143, %v142
    %v156 = vpack.c.b16 %v145, %v144
    %v157 = vpack.c.b16 %v147, %v146
    %v158 = vpack.c.b16 %v149, %v148
    %v159 = vpack.c.b16 %v151, %v150
    %168 = vmatprep.subr.bf16.mxu0 0
    %169 = vmatpush1.bf16.msra.mxu0 %v152
    %170 = vmatprep.subr.bf16.mxu0 0
    %171 = vmatpush1.bf16.msra.mxu0 %v153
    %172 = vmatprep.subr.bf16.mxu0 0
    %173 = vmatpush1.bf16.msra.mxu0 %v154
    %174 = vmatprep.subr.bf16.mxu0 0
    %175 = vmatpush1.bf16.msra.mxu0 %v155
    %176 = vmatprep.subr.bf16.mxu0 0
    %177 = vmatpush1.bf16.msra.mxu0 %v156
    %178 = vmatprep.subr.bf16.mxu0 0
    %179 = vmatpush1.bf16.msra.mxu0 %v157
    %180 = vmatprep.subr.bf16.mxu0 0
    %181 = vmatpush1.bf16.msra.mxu0 %v158
    %182 = vmatprep.subr.bf16.mxu0 0
    %183 = vmatpush1.bf16.msra.mxu0 %v159
    %184 = vmatprep.subr.bf16.mxu0 0
    %185 = vmatpush1.bf16.msra.mxu0 0
    %186 = vmatprep.subr.bf16.mxu0 0
    %187 = vmatpush1.bf16.msra.mxu0 0
    %188 = vmatprep.subr.bf16.mxu0 0
    %189 = vmatpush1.bf16.msra.mxu0 0
    %190 = vmatprep.subr.bf16.mxu0 0
    %191 = vmatpush1.bf16.msra.mxu0 0
    %192 = vmatprep.subr.bf16.mxu0 0
    %193 = vmatpush1.bf16.msra.mxu0 0
    %194 = vmatprep.subr.bf16.mxu0 0
    %195 = vmatpush1.bf16.msra.mxu0 0
    %196 = vmatprep.subr.bf16.mxu0 0
    %197 = vmatpush1.bf16.msra.mxu0 0
    %198 = vmatprep.subr.bf16.mxu0 0
    %199 = vmatpush1.bf16.msra.mxu0 0
    %200 = vmatprep.mubr.bf16.mxu0 0
    %201 = vmatmul.mubr.bf16.gmra.mrb[0].mxu0 %v118
    %v202 = vpop.f32.mrb[0].mxu0
    %v203 = vadd.f32 %v112, %v202
    %v204 = vpop.f32.mrb[0].mxu0
    %v205 = vpop.f32.mrb[0].mxu0
    %v206 = vadd.f32 %v112, %v205
    %v207 = vpop.f32.mrb[0].mxu0
    %208 = vdwg.mxu0
    %v209 = vpack.c.bf16 %v206, %v203
    %v210 = vld [vmem:[#allocation7] sm:$0xf]
    %v211 = vld [vmem:[#allocation7 + $0x4] sm:$0xf]
    %v212 = vld [vmem:[#allocation7 + $0x8] sm:$0xf]
    %v213 = vld [vmem:[#allocation7 + $0xc] sm:$0xf]
    %v214 = vld [vmem:[#allocation7 + $0x10] sm:$0xf]
    %v215 = vld [vmem:[#allocation7 + $0x14] sm:$0xf]
    %v216 = vld [vmem:[#allocation7 + $0x18] sm:$0xf]
    %v217 = vld [vmem:[#allocation7 + $0x1c] sm:$0xf]
    %v218 = vld [vmem:[#allocation7 + $0x20] sm:$0xf]
    %v219 = vld [vmem:[#allocation7 + $0x24] sm:$0xf]
    %v220 = vld [vmem:[#allocation7 + $0x28] sm:$0xf]
    %v221 = vld [vmem:[#allocation7 + $0x2c] sm:$0xf]
    %v222 = vld [vmem:[#allocation7 + $0x30] sm:$0xf]
    %v223 = vld [vmem:[#allocation7 + $0x34] sm:$0xf]
    %v224 = vld [vmem:[#allocation7 + $0x38] sm:$0xf]
    %v225 = vld [vmem:[#allocation7 + $0x3c] sm:$0xf]
    %v226 = vld [vmem:[%s4] sm:$0x1]
    %v228 = vlaneseq
    %v229 = vshrl.u32 %v228, 7
    %v230 = vsub.s32 0, %v229
    %v231 = vrot.slane %v226, %v230
    %v249 = vunpack.c.l.b16 %v210
    %v250 = vunpack.c.l.b16 %v211
    %v251 = vunpack.c.l.b16 %v212
    %v252 = vunpack.c.l.b16 %v213
    %v253 = vunpack.c.l.b16 %v214
    %v254 = vunpack.c.l.b16 %v215
    %v255 = vunpack.c.l.b16 %v216
    %v256 = vunpack.c.l.b16 %v217
    %v257 = vunpack.c.l.b16 %v218
    %v258 = vunpack.c.l.b16 %v219
    %v259 = vunpack.c.l.b16 %v220
    %v260 = vunpack.c.l.b16 %v221
    %v261 = vunpack.c.l.b16 %v222
    %v262 = vunpack.c.l.b16 %v223
    %v263 = vunpack.c.l.b16 %v224
    %v264 = vunpack.c.l.b16 %v225
    %v265 = vpack.c.b16 %v250, %v249
    %v266 = vpack.c.b16 %v252, %v251
    %v267 = vpack.c.b16 %v254, %v253
    %v268 = vpack.c.b16 %v256, %v255
    %v269 = vpack.c.b16 %v258, %v257
    %v270 = vpack.c.b16 %v260, %v259
    %v271 = vpack.c.b16 %v262, %v261
    %v272 = vpack.c.b16 %v264, %v263
    %281 = vmatprep.subr.bf16.mxu0 0
    %282 = vmatpush1.bf16.msra.mxu0 %v265
    %283 = vmatprep.subr.bf16.mxu0 0
    %284 = vmatpush1.bf16.msra.mxu0 %v266
    %285 = vmatprep.subr.bf16.mxu0 0
    %286 = vmatpush1.bf16.msra.mxu0 %v267
    %287 = vmatprep.subr.bf16.mxu0 0
    %288 = vmatpush1.bf16.msra.mxu0 %v268
    %289 = vmatprep.subr.bf16.mxu0 0
    %290 = vmatpush1.bf16.msra.mxu0 %v269
    %291 = vmatprep.subr.bf16.mxu0 0
    %292 = vmatpush1.bf16.msra.mxu0 %v270
    %293 = vmatprep.subr.bf16.mxu0 0
    %294 = vmatpush1.bf16.msra.mxu0 %v271
    %295 = vmatprep.subr.bf16.mxu0 0
    %296 = vmatpush1.bf16.msra.mxu0 %v272
    %297 = vmatprep.subr.bf16.mxu0 0
    %298 = vmatpush1.bf16.msra.mxu0 0
    %299 = vmatprep.subr.bf16.mxu0 0
    %300 = vmatpush1.bf16.msra.mxu0 0
    %301 = vmatprep.subr.bf16.mxu0 0
    %302 = vmatpush1.bf16.msra.mxu0 0
    %303 = vmatprep.subr.bf16.mxu0 0
    %304 = vmatpush1.bf16.msra.mxu0 0
    %305 = vmatprep.subr.bf16.mxu0 0
    %306 = vmatpush1.bf16.msra.mxu0 0
    %307 = vmatprep.subr.bf16.mxu0 0
    %308 = vmatpush1.bf16.msra.mxu0 0
    %309 = vmatprep.subr.bf16.mxu0 0
    %310 = vmatpush1.bf16.msra.mxu0 0
    %311 = vmatprep.subr.bf16.mxu0 0
    %312 = vmatpush1.bf16.msra.mxu0 0
    %313 = vmatprep.mubr.bf16.mxu0 0
    %314 = vmatmul.mubr.bf16.gmra.mrb[0].mxu0 %v209
    %v315 = vpop.f32.mrb[0].mxu0
    %v316 = vadd.f32 %v231, %v315
    %v317 = vpop.f32.mrb[0].mxu0
    %v318 = vpop.f32.mrb[0].mxu0
    %v319 = vadd.f32 %v231, %v318
    %v320 = vpop.f32.mrb[0].mxu0
    %321 = vdwg.mxu0
    %v322 = vmax.f32 %v316, 0.0
    %v323 = vmax.f32 %v319, 0.0
    %v324 = vadd.f32 %v322, %v203
    %v325 = vadd.f32 %v323, %v206
    %v326 = vpack.c.bf16 %v325, %v324
    %v327 = vld [vmem:[#allocation8] sm:$0xf]
    %v328 = vld [vmem:[#allocation8 + $0x4] sm:$0xf]
    %v329 = vld [vmem:[#allocation8 + $0x8] sm:$0xf]
    %v330 = vld [vmem:[#allocation8 + $0xc] sm:$0xf]
    %v331 = vld [vmem:[#allocation8 + $0x10] sm:$0xf]
    %v332 = vld [vmem:[#allocation8 + $0x14] sm:$0xf]
    %v333 = vld [vmem:[#allocation8 + $0x18] sm:$0xf]
    %v334 = vld [vmem:[#allocation8 + $0x1c] sm:$0xf]
    %v335 = vld [vmem:[#allocation8 + $0x20] sm:$0xf]
    %v336 = vld [vmem:[#allocation8 + $0x24] sm:$0xf]
    %v337 = vld [vmem:[#allocation8 + $0x28] sm:$0xf]
    %v338 = vld [vmem:[#allocation8 + $0x2c] sm:$0xf]
    %v339 = vld [vmem:[#allocation8 + $0x30] sm:$0xf]
    %v340 = vld [vmem:[#allocation8 + $0x34] sm:$0xf]
    %v341 = vld [vmem:[#allocation8 + $0x38] sm:$0xf]
    %v342 = vld [vmem:[#allocation8 + $0x3c] sm:$0xf]
    %v343 = vld [vmem:[%s6] sm:$0x1]
    %v345 = vlaneseq
    %v346 = vshrl.u32 %v345, 7
    %v347 = vsub.s32 0, %v346
    %v348 = vrot.slane %v343, %v347
    %v366 = vunpack.c.l.b16 %v327
    %v367 = vunpack.c.l.b16 %v328
    %v368 = vunpack.c.l.b16 %v329
    %v369 = vunpack.c.l.b16 %v330
    %v370 = vunpack.c.l.b16 %v331
    %v371 = vunpack.c.l.b16 %v332
    %v372 = vunpack.c.l.b16 %v333
    %v373 = vunpack.c.l.b16 %v334
    %v374 = vunpack.c.l.b16 %v335
    %v375 = vunpack.c.l.b16 %v336
    %v376 = vunpack.c.l.b16 %v337
    %v377 = vunpack.c.l.b16 %v338
    %v378 = vunpack.c.l.b16 %v339
    %v379 = vunpack.c.l.b16 %v340
    %v380 = vunpack.c.l.b16 %v341
    %v381 = vunpack.c.l.b16 %v342
    %v382 = vpack.c.b16 %v367, %v366
    %v383 = vpack.c.b16 %v369, %v368
    %v384 = vpack.c.b16 %v371, %v370
    %v385 = vpack.c.b16 %v373, %v372
    %v386 = vpack.c.b16 %v375, %v374
    %v387 = vpack.c.b16 %v377, %v376
    %v388 = vpack.c.b16 %v379, %v378
    %v389 = vpack.c.b16 %v381, %v380
    %398 = vmatprep.subr.bf16.mxu0 0
    %399 = vmatpush1.bf16.msra.mxu0 %v382
    %400 = vmatprep.subr.bf16.mxu0 0
    %401 = vmatpush1.bf16.msra.mxu0 %v383
    %402 = vmatprep.subr.bf16.mxu0 0
    %403 = vmatpush1.bf16.msra.mxu0 %v384
    %404 = vmatprep.subr.bf16.mxu0 0
    %405 = vmatpush1.bf16.msra.mxu0 %v385
    %406 = vmatprep.subr.bf16.mxu0 0
    %407 = vmatpush1.bf16.msra.mxu0 %v386
    %408 = vmatprep.subr.bf16.mxu0 0
    %409 = vmatpush1.bf16.msra.mxu0 %v387
    %410 = vmatprep.subr.bf16.mxu0 0
    %411 = vmatpush1.bf16.msra.mxu0 %v388
    %412 = vmatprep.subr.bf16.mxu0 0
    %413 = vmatpush1.bf16.msra.mxu0 %v389
    %414 = vmatprep.subr.bf16.mxu0 0
    %415 = vmatpush1.bf16.msra.mxu0 0
    %416 = vmatprep.subr.bf16.mxu0 0
    %417 = vmatpush1.bf16.msra.mxu0 0
    %418 = vmatprep.subr.bf16.mxu0 0
    %419 = vmatpush1.bf16.msra.mxu0 0
    %420 = vmatprep.subr.bf16.mxu0 0
    %421 = vmatpush1.bf16.msra.mxu0 0
    %422 = vmatprep.subr.bf16.mxu0 0
    %423 = vmatpush1.bf16.msra.mxu0 0
    %424 = vmatprep.subr.bf16.mxu0 0
    %425 = vmatpush1.bf16.msra.mxu0 0
    %426 = vmatprep.subr.bf16.mxu0 0
    %427 = vmatpush1.bf16.msra.mxu0 0
    %428 = vmatprep.subr.bf16.mxu0 0
    %429 = vmatpush1.bf16.msra.mxu0 0
    %430 = vmatprep.mubr.bf16.mxu0 0
    %431 = vmatmul.mubr.bf16.gmra.mrb[0].mxu0 %v326
    %v432 = vpop.f32.mrb[0].mxu0
    %v433 = vadd.f32 %v348, %v432
    %v434 = vpop.f32.mrb[0].mxu0
    %v435 = vpop.f32.mrb[0].mxu0
    %v436 = vadd.f32 %v348, %v435
    %v437 = vpop.f32.mrb[0].mxu0
    %438 = vdwg.mxu0
    %v439 = vmax.f32 %v433, 0.0
    %v440 = vmax.f32 %v436, 0.0
    %v441 = vld [vmem:[%s7] sm:$0x1]
    %v442 = vld [vmem:[%s8] sm:$0x1]
    %v443 = vlaneseq
    %v444 = vshrl.u32 %v443, 7
    %v445 = vadd.s32 %v444, 8
    %vm446 = vcmp.lt.s32.totalorder %v444, 8
    %vm447 = vcmp.lt.s32.totalorder %v445, 8
    %v448 = vsel %vm446, 1, 0
    %v449 = vsel %vm447, 1, 0
    %v450 = vcvt.s32.f32 %v448
    %v451 = vcvt.s32.f32 %v449
    %v452 = vmul.f32 %v439, %v450
    %v453 = vmul.f32 %v440, %v451
    %v454 = vadd.f32 %v452, %v453
    %v455 = vrot.slane %v454, 4
    %v456 = vadd.f32 %v454, %v455
    %v457 = vrot.slane %v456, 2
    %v458 = vadd.f32 %v456, %v457
    %v459 = vrot.slane %v458, 1
    %v460 = vadd.f32 %v458, %v459
    %v461 = vmul.f32 %v460, 0.125
    %v462 = vsub.f32 %v439, %v461
    %v463 = vsub.f32 %v440, %v461
    %v464 = vmul.f32 %v462, %v450
    %v465 = vmul.f32 %v463, %v451
    %v466 = vmul.f32 %v464, %v464
    %v467 = vmul.f32 %v465, %v465
    %v468 = vadd.f32 %v466, %v467
    %v469 = vrot.slane %v468, 4
    %v470 = vadd.f32 %v468, %v469
    %v471 = vrot.slane %v470, 2
    %v472 = vadd.f32 %v470, %v471
    %v473 = vrot.slane %v472, 1
    %v474 = vadd.f32 %v472, %v473
    %v475 = vmul.f32 %v474, 0.125
    %v476 = vadd.f32 %v475, 1e-05
    %v477 = vrsqrt.pop %v476
    %v478 = vmul.f32 %v462, %v477
    %v479 = vmul.f32 %v463, %v477
    %v481 = vlaneseq
    %v482 = vshrl.u32 %v481, 7
    %v483 = vsub.s32 0, %v482
    %v484 = vrot.slane %v441, %v483
    %v486 = vmul.f32 %v478, %v484
    %v487 = vmul.f32 %v479, %v484
    %v489 = vlaneseq
    %v490 = vshrl.u32 %v489, 7
    %v491 = vsub.s32 0, %v490
    %v492 = vrot.slane %v442, %v491
    %v494 = vadd.f32 %v486, %v492
    %v495 = vadd.f32 %v487, %v492
    %496 = vst [vmem:[#allocation10] sm:$0xff] %v494
    %497 = vst [vmem:[#allocation10 + $0x8] sm:$0xff] %v495
    // Predicated region
    $region54: #{tpu_custom_call.1} parent=1 // pred_check
      _
    $region55: #{tpu_custom_call.1} parent=1 // pred_check_branch
      %499 = sbr.rel (0) target = $region57
    $region56: #{tpu_custom_call.1} parent=1 // pred_region
      %s501 = ssub.s32 256, 256
      %502 = vsyncadd [#allocation4], %s501
      %s503 = sshll.u32 [#allocation10], 4
      %s504 = int_to_ptr.vmem [resolvable:$true] %s503
      %509 = dma.vmem_to_hbm [thread:$0]  %s504, 256, %s9, [#allocation4], 128, 128, 8
    $region57: #{tpu_custom_call.1} parent=1 // pred_fallthru
      _
    // Predicated region
    $region58: #{tpu_custom_call.1} parent=1 // pred_check
      _
    $region59: #{tpu_custom_call.1} parent=1 // pred_check_branch
      %511 = sbr.rel (0) target = $region61
    $region60: #{tpu_custom_call.1} parent=1 // pred_region
      %512 = dma.done [#allocation4], 256
    $region61: #{tpu_custom_call.1} parent=1 // pred_fallthru
      _
    %513 = vsyncpa [#allocation3], 1
    %514 = vsyncpa [#allocation6], 1
    %515 = vsyncpa [#allocation9], 1
    %516 = vsyncpa [#allocation4], 1

</llo_original>
